<compile_context>
chip_gen: v6e
topology: v6e:2x2x1
jax: 0.10.0
libtpu: 0.0.40
codegen_flags: <defaults>
</compile_context>

<pallas_src>
import math

import jax
import jax.numpy as jnp
from jax.experimental import pallas as pl
from jax.experimental.pallas import tpu as pltpu

LANE = 128       # lane width: feature dims / small-N tiles padded to this
SUBLANE = 8
TILE_K = 512     # adj contraction tile (cols of adj == rows of x/support)
TILE_M = 1024    # adj row tile (2*TILE_K); fits v5e's 16 MiB scoped VMEM default


def _round_up(v, m):
    return ((v + m - 1) // m) * m


def _choose_tiles(B, N):
    """Pick (tm, tk, n_p) with n_p % tm == 0 and n_p % tk == 0."""
    if N <= TILE_K:
        # Small graph: lane-dense single K step.
        n_p = _round_up(N, LANE)
        tm = tk = n_p
        # v7x has 2 TensorCores: keep >= 2 blocks along the parallel axes.
        if B == 1 and n_p >= 2 * LANE and (n_p // 2) % SUBLANE == 0:
            tm = n_p // 2
        return tm, tk, n_p
    tk = TILE_K
    n_p = _round_up(N, tk)
    tm = tk
    # Enlarge TM (decoupled from TK) to cut x/support re-streaming and per-step
    # overhead, but only if >= 2 parallel blocks remain (v7x dual-TC).
    if n_p % TILE_M == 0 and B * (n_p // TILE_M) >= 2:
        tm = TILE_M
    return tm, tk, n_p


def _gcn_reassoc_kernel(adj_ref, x_ref, w_ref, o_ref, acc_ref):
    # adj_ref: (1, TM, TK) f32|bf16   x_ref: (1, TK, FinP) f32|bf16
    # w_ref:   (FinP, FoutP) bf16     o_ref: (1, TM, FoutP) f32
    # acc_ref: (TM, FinP) f32         -- accumulates adj @ x over the K axis
    k = pl.program_id(2)

    @pl.when(k == 0)
    def _():
        acc_ref[...] = jnp.zeros_like(acc_ref)

    a = adj_ref[0].astype(jnp.bfloat16)    # in-kernel VPU cast: no HBM pre-pass
    xk = x_ref[0].astype(jnp.bfloat16)
    acc_ref[...] += jnp.dot(a, xk, preferred_element_type=jnp.float32)

    @pl.when(k == pl.num_programs(2) - 1)
    def _():
        o_ref[0] = jnp.dot(acc_ref[...].astype(jnp.bfloat16), w_ref[...],
                           preferred_element_type=jnp.float32).astype(o_ref.dtype)


def _gcn_bmm_kernel(adj_ref, s_ref, o_ref):
    # adj_ref: (1, TM, TK)   s_ref: (1, TK, FoutP)   o_ref: (1, TM, FoutP) f32
    # o_ref's index_map ignores k -> the f32 block stays VMEM-resident across K,
    # so we accumulate into it directly (no scratch, no final copy).
    k = pl.program_id(2)

    @pl.when(k == 0)
    def _():
        o_ref[...] = jnp.zeros_like(o_ref)

    a = adj_ref[0].astype(jnp.bfloat16)
    s = s_ref[0].astype(jnp.bfloat16)
    o_ref[0] += jnp.dot(a, s, preferred_element_type=jnp.float32)


def graph_convolution(x, adj, weight, bias=None):
    """GCN forward: adj @ (x @ weight) [+ bias].

    x: (B, N, Fin) f32, adj: (B, N, N) f32, weight: (Fin, Fout) f32.
    Returns (B, N, Fout) f32.  Note: MXU input streams are bf16 (f32 accumulate).
    """
    B, N, Fin = x.shape
    Fout = weight.shape[1]
    assert adj.shape == (B, N, N)
    assert weight.shape == (Fin, Fout)

    reassociate = Fin <= Fout            # contract over N with the smaller feat dim
    fin_p = _round_up(Fin, LANE)
    fout_p = _round_up(Fout, LANE)
    tm, tk, n_p = _choose_tiles(B, N)
    grid = (B, n_p // tm, n_p // tk)

    # adj stream: pass f32 straight through when already aligned (cast per-tile
    # in-kernel).  Only pad (and then stream bf16) when padding is unavoidable.
    if n_p == N:
        adj_in = adj
    else:
        adj_in = jnp.pad(adj, ((0, 0), (0, n_p - N), (0, n_p - N))
                         ).astype(jnp.bfloat16)

    if reassociate:
        if n_p == N and fin_p == Fin:
            feat_in = x
        else:
            feat_in = jnp.pad(x, ((0, 0), (0, n_p - N), (0, fin_p - Fin))
                              ).astype(jnp.bfloat16)
        w_in = jnp.pad(weight, ((0, fin_p - Fin), (0, fout_p - Fout))
                       ).astype(jnp.bfloat16)
        feat_cols = fin_p
    else:
        # Hoist x @ W out of the kernel's K loop: one f32 XLA matmul, then the
        # kernel is a pure tiled bmm(adj, support).
        support = jnp.einsum("bnf,fo->bno", x, weight)
        if n_p == N and fout_p == Fout:
            feat_in = support
        else:
            feat_in = jnp.pad(support, ((0, 0), (0, n_p - N), (0, fout_p - Fout))
                              ).astype(jnp.bfloat16)
        feat_cols = fout_p

    # Advisory cost estimate (includes the feat re-fetch factor of n_p/tm).
    adj_bytes = adj_in.size * adj_in.dtype.itemsize
    feat_bytes = feat_in.size * feat_in.dtype.itemsize * (n_p // tm)
    out_bytes = B * n_p * fout_p * 4
    if reassociate:
        flops = 2 * B * n_p * n_p * fin_p + 2 * B * n_p * fin_p * fout_p
        extra_bytes = w_in.size * w_in.dtype.itemsize
    else:
        flops = 2 * B * n_p * n_p * fout_p
        extra_bytes = 0

    adj_spec = pl.BlockSpec((1, tm, tk), lambda b, m, k: (b, m, k))
    feat_spec = pl.BlockSpec((1, tk, feat_cols), lambda b, m, k: (b, k, 0))
    out_spec = pl.BlockSpec((1, tm, fout_p), lambda b, m, k: (b, m, 0))

    if reassociate:
        kernel = _gcn_reassoc_kernel
        in_specs = [adj_spec, feat_spec,
                    pl.BlockSpec((fin_p, fout_p), lambda b, m, k: (0, 0))]
        operands = (adj_in, feat_in, w_in)
        scratch = [pltpu.VMEM((tm, fin_p), jnp.float32)]
    else:
        kernel = _gcn_bmm_kernel
        in_specs = [adj_spec, feat_spec]
        operands = (adj_in, feat_in)
        scratch = []

    out = pl.pallas_call(
        kernel,
        out_shape=jax.ShapeDtypeStruct((B, n_p, fout_p), jnp.float32),
        grid_spec=pltpu.PrefetchScalarGridSpec(
            num_scalar_prefetch=0,
            grid=grid,
            in_specs=in_specs,
            out_specs=out_spec,
            scratch_shapes=scratch,
        ),
        compiler_params=pltpu.CompilerParams(
            dimension_semantics=("parallel", "parallel", "arbitrary"),
        ),
        cost_estimate=pl.CostEstimate(
            flops=flops, transcendentals=0,
            bytes_accessed=adj_bytes + feat_bytes + out_bytes + extra_bytes),
    )(*operands)

    if n_p != N or fout_p != Fout:
        out = out[:, :N, :Fout]
    if bias is not None:            # module default is bias=None -> not taken
        out = out + bias
    return out


def reference(x, adj, weight):
    # Pure-JAX f32 reference of the PyTorch forward (bias is None).
    support = jnp.einsum("bnf,fo->bno", x, weight)
    return jnp.einsum("bnm,bmo->bno", adj, support)


if __name__ == "__main__":
    key = jax.random.PRNGKey(0)
    B, N = 2, 16
    in_features, out_features = 8, 32

    k_x, k_adj, k_w, k_x2, k_w2 = jax.random.split(key, 5)

    x = jax.random.normal(k_x, (B, N, in_features), dtype=jnp.float32)

    # Deterministic adjacency: random nonneg matrix, row-normalized (GCN-style).
    adj_raw = jax.random.uniform(k_adj, (B, N, N), dtype=jnp.float32)
    adj = adj_raw / jnp.sum(adj_raw, axis=-1, keepdims=True)

    # Weight init mimicking reset_parameters(): effective init is
    # uniform(-stdv, stdv) with stdv = 1/sqrt(out_features).
    stdv = 1.0 / math.sqrt(out_features)
    weight = jax.random.uniform(
        k_w, (in_features, out_features), dtype=jnp.float32,
        minval=-stdv, maxval=stdv,
    )

    out = jax.block_until_ready(graph_convolution(x, adj, weight))
    ref = reference(x, adj, weight)
    assert out.shape == (B, N, out_features)
    # bf16 MXU input streams (f32 accumulation) -> loosened tolerance vs f32 ref.
    assert jnp.allclose(out, ref, atol=2e-2, rtol=2e-2), \
        float(jnp.max(jnp.abs(out - ref)))

    # Also exercise the Fin > Fout (hoisted support / tiled-bmm) path.
    x2 = jax.random.normal(k_x2, (B, N, out_features), dtype=jnp.float32)
    stdv2 = 1.0 / math.sqrt(in_features)
    weight2 = jax.random.uniform(
        k_w2, (out_features, in_features), dtype=jnp.float32,
        minval=-stdv2, maxval=stdv2,
    )
    out2 = jax.block_until_ready(graph_convolution(x2, adj, weight2))
    ref2 = reference(x2, adj, weight2)
    assert out2.shape == (B, N, in_features)
    assert jnp.allclose(out2, ref2, atol=2e-2, rtol=2e-2), \
        float(jnp.max(jnp.abs(out2 - ref2)))

    print("KERNEL_OK")
</pallas_src>

<mosaic_0001>
module attributes {stable_mosaic.version = 11 : i64} {
  func.func @_gcn_reassoc_kernel(%arg0: i32, %arg1: i32, %arg2: i32, %arg3: memref<1x128x128xbf16, #tpu.memory_space<vmem>>, %arg4: memref<1x128x128xbf16, #tpu.memory_space<vmem>>, %arg5: memref<128x128xbf16, #tpu.memory_space<vmem>>, %arg6: memref<1x128x128xf32, #tpu.memory_space<vmem>>, %arg7: memref<128x128xf32, #tpu.memory_space<vmem>>) attributes {dimension_semantics = [#tpu.dimension_semantics<parallel>, #tpu.dimension_semantics<parallel>, #tpu.dimension_semantics<arbitrary>], iteration_bounds = array<i64: 2, 1, 1>, scalar_prefetch = 0 : i64, scratch_operands = 1 : i64, tpu.core_type = #tpu.core_type<tc>, window_params = [{transform_indices = @transform_0, window_bounds = array<i64: 1, 128, 128>}, {transform_indices = @transform_1, window_bounds = array<i64: 1, 128, 128>}, {pipeline_mode = #tpu.pipeline_mode<synchronous>, transform_indices = @transform_2, window_bounds = array<i64: 128, 128>}, {transform_indices = @transform_3, window_bounds = array<i64: 1, 128, 128>}]} {
    %c0_i32 = arith.constant 0 : i32
    %0 = arith.cmpi eq, %arg2, %c0_i32 : i32
    %1 = arith.extui %0 : i1 to i32
    %c0_i32_0 = arith.constant 0 : i32
    %2 = arith.cmpi ne, %1, %c0_i32_0 : i32
    scf.if %2 {
      %cst_12 = arith.constant 0.000000e+00 : f32
      %14 = vector.broadcast %cst_12 : f32 to vector<128x128xf32>
      %c0_13 = arith.constant 0 : index
      %c0_14 = arith.constant 0 : index
      %15 = vector.load %arg7[%c0_13, %c0_14] : memref<128x128xf32, #tpu.memory_space<vmem>>, vector<128x128xf32>
      tpu.vector_store %arg7[%c0_13, %c0_14], %14 {strides = array<i32>} : memref<128x128xf32, #tpu.memory_space<vmem>>, vector<128x128xf32>,
    } else {
    }
    %c0 = arith.constant 0 : index
    %c0_1 = arith.constant 0 : index
    %c0_2 = arith.constant 0 : index
    %3 = vector.load %arg3[%c0, %c0_1, %c0_2] : memref<1x128x128xbf16, #tpu.memory_space<vmem>>, vector<1x128x128xbf16>
    %4 = vector.shape_cast %3 : vector<1x128x128xbf16> to vector<128x128xbf16>
    %c0_3 = arith.constant 0 : index
    %c0_4 = arith.constant 0 : index
    %c0_5 = arith.constant 0 : index
    %5 = vector.load %arg4[%c0_3, %c0_4, %c0_5] : memref<1x128x128xbf16, #tpu.memory_space<vmem>>, vector<1x128x128xbf16>
    %6 = vector.shape_cast %5 : vector<1x128x128xbf16> to vector<128x128xbf16>
    %c0_6 = arith.constant 0 : index
    %c0_7 = arith.constant 0 : index
    %7 = vector.load %arg7[%c0_6, %c0_7] : memref<128x128xf32, #tpu.memory_space<vmem>>, vector<128x128xf32>
    %cst = arith.constant dense<0.000000e+00> : vector<128x128xf32>
    %8 = tpu.matmul %4, %6, %cst {dimension_numbers = #tpu.dot_dimension_numbers<[1], [0], [0], [1], [0, 0, 1, 1], [], []>} : vector<128x128xbf16>, vector<128x128xbf16>, vector<128x128xf32> -> vector<128x128xf32>
    %9 = arith.addf %7, %8 : vector<128x128xf32>
    %c0_8 = arith.constant 0 : index
    %c0_9 = arith.constant 0 : index
    %10 = vector.load %arg7[%c0_8, %c0_9] : memref<128x128xf32, #tpu.memory_space<vmem>>, vector<128x128xf32>
    tpu.vector_store %arg7[%c0_8, %c0_9], %9 {strides = array<i32>} : memref<128x128xf32, #tpu.memory_space<vmem>>, vector<128x128xf32>,
    %c0_i32_10 = arith.constant 0 : i32
    %11 = arith.cmpi eq, %arg2, %c0_i32_10 : i32
    %12 = arith.extui %11 : i1 to i32
    %c0_i32_11 = arith.constant 0 : i32
    %13 = arith.cmpi ne, %12, %c0_i32_11 : i32
    scf.if %13 {
      %c0_12 = arith.constant 0 : index
      %c0_13 = arith.constant 0 : index
      %14 = vector.load %arg7[%c0_12, %c0_13] : memref<128x128xf32, #tpu.memory_space<vmem>>, vector<128x128xf32>
      %15 = arith.truncf %14 : vector<128x128xf32> to vector<128x128xbf16>
      %c0_14 = arith.constant 0 : index
      %c0_15 = arith.constant 0 : index
      %16 = vector.load %arg5[%c0_14, %c0_15] : memref<128x128xbf16, #tpu.memory_space<vmem>>, vector<128x128xbf16>
      %cst_16 = arith.constant dense<0.000000e+00> : vector<128x128xf32>
      %17 = tpu.matmul %15, %16, %cst_16 {dimension_numbers = #tpu.dot_dimension_numbers<[1], [0], [0], [1], [0, 0, 1, 1], [], []>} : vector<128x128xbf16>, vector<128x128xbf16>, vector<128x128xf32> -> vector<128x128xf32>
      %c0_17 = arith.constant 0 : index
      %c0_18 = arith.constant 0 : index
      %c0_19 = arith.constant 0 : index
      %18 = vector.load %arg6[%c0_17, %c0_18, %c0_19] : memref<1x128x128xf32, #tpu.memory_space<vmem>>, vector<1x128x128xf32>
      %19 = vector.shape_cast %18 : vector<1x128x128xf32> to vector<128x128xf32>
      %20 = vector.shape_cast %17 : vector<128x128xf32> to vector<1x128x128xf32>
      tpu.vector_store %arg6[%c0_17, %c0_18, %c0_19], %20 {strides = array<i32>} : memref<1x128x128xf32, #tpu.memory_space<vmem>>, vector<1x128x128xf32>,
    } else {
    }
    return
  }
  func.func @transform_0(%arg0: i32, %arg1: i32, %arg2: i32) -> (i32, i32, i32) {
    %c0_i32 = arith.constant 0 : i32
    return %arg0, %arg1, %arg2 : i32, i32, i32
  }
  func.func @transform_1(%arg0: i32, %arg1: i32, %arg2: i32) -> (i32, i32, i32) {
    %c0_i32 = arith.constant 0 : i32
    %c0_i32_0 = arith.constant 0 : i32
    return %arg0, %arg2, %c0_i32 : i32, i32, i32
  }
  func.func @transform_2(%arg0: i32, %arg1: i32, %arg2: i32) -> (i32, i32) {
    %c0_i32 = arith.constant 0 : i32
    %c0_i32_0 = arith.constant 0 : i32
    %c0_i32_1 = arith.constant 0 : i32
    return %c0_i32, %c0_i32_0 : i32, i32
  }
  func.func @transform_3(%arg0: i32, %arg1: i32, %arg2: i32) -> (i32, i32, i32) {
    %c0_i32 = arith.constant 0 : i32
    %c0_i32_0 = arith.constant 0 : i32
    return %arg0, %arg1, %c0_i32 : i32, i32, i32
  }
}

</mosaic_0001>

<llo_original>
// kernel: tpu_custom_call.1
$region0: #{tpu_custom_call.1}
  #allocation0 [shape = 'u32[]', space=smem, size = 0x4, offset = 0x4, fixed_abs, tag = 'smem constant byte address 0x4 - core index']
  #allocation1 [shape = 'u32[144,128]{1,0:T(1,128)}', space=vmem, size = 0x12000, scoped, tag = 'internal scratch']
  #allocation2 [shape = 'f32[128,128]{1,0:T(8,128)}', space=vmem, size = 0x10000, scoped, tag = 'scratch operand']
  %s0 = inlined_call_operand.hbm [shape: bf16[2,128,128], index: 0, kind: input, shape index: {}]
  %s1 = inlined_call_operand.hbm [shape: bf16[2,128,128], index: 1, kind: input, shape index: {}]
  %s2 = inlined_call_operand.hbm [shape: bf16[128,128], index: 2, kind: input, shape index: {}]
  %s3 = inlined_call_operand.hbm [shape: f32[2,128,128], index: 3, kind: output, shape index: {}]
  %s4 = sld [smem:[#allocation0]]
  $region65: #{tpu_custom_call.1} parent=0
    _
  %s6 = ssub.s32 1, %s4
  %s7 = scalar_select 0, %s6, %s4
  $region1: #{tpu_custom_call.1} parent=0
    #allocation3 [shape = 'u8[65536]{0}', space=vmem, size = 0x10000, scoped, tag = 'input window, operand 0']
    #allocation4 [shape = 's32[2]{0}', space=sflag, size = 0x8, scoped, tag = 'scoped memory for tpu_custom_call.1']
    #allocation5 [shape = 's32[2]{0}', space=sflag, size = 0x8, scoped, tag = 'scoped memory for tpu_custom_call.1']
    #allocation6 [shape = 'u8[65536]{0}', space=vmem, size = 0x10000, scoped, tag = 'input window, operand 1']
    #allocation7 [shape = 's32[2]{0}', space=sflag, size = 0x8, scoped, tag = 'scoped memory for tpu_custom_call.1']
    #allocation8 [shape = 'u8[32768]{0}', space=vmem, size = 0x8000, scoped, tag = 'input window, operand 2, single buffered']
    #allocation9 [shape = 'u8[131072]{0}', space=vmem, size = 0x20000, scoped, tag = 'output window, operand 0']
    %8 = vsyncpa [#allocation4], 0
    %s9 = scalar_lea.sflag [#allocation4], 1
    %10 = vsyncpa %s9, 0
    %11 = vsyncpa [#allocation7], 0
    %s12 = scalar_lea.sflag [#allocation7], 1
    %13 = vsyncpa %s12, 0
    %14 = vsyncpa [#allocation5], 0
    %s15 = scalar_lea.sflag [#allocation5], 1
    %16 = vsyncpa %s15, 0
    loop: start=0, step=1, limit=4
    $region2: #{tpu_custom_call.1} parent=1 // loop_pre_header
      _
    $region3: #{tpu_custom_call.1} parent=1 // loop_header
      %s18 = sphi 0, %s22
      %p19 = scmp.ge.s32.totalorder %s18, 4
      %s25 = sphi 0, %s44
      %s26 = sphi 0, %s40
      %s27 = sphi 0, %s36
      %s28 = sphi 0, %s25
      %s29 = sphi 0, %s26
      %s30 = sphi 0, %s27
      %s31 = sphi 0, %s28
      %s32 = sphi 0, %s29
      %s33 = sphi 0, %s30
      %s51 = sphi 0, %s53
      %s54 = sphi 0, %s51
      %s55 = sphi 0, %s54
      %s71 = sphi 0, %s55
      %s79 = sphi 0, %s81
      %s82 = sphi 0, %s79
      %s83 = sphi 0, %s82
      %s99 = sphi 0, %s83
      %s103 = sphi 0, %s103
      %s105 = sphi 0, %s103
      %s106 = sphi 0, %s105
      %s120 = sphi 0, %s106
      %s128 = sphi 0, %s130
      %s131 = sphi 0, %s128
      %s132 = sphi 0, %s131
      %s148 = sphi 0, %s132
    $region4: #{tpu_custom_call.1} parent=1 // loop_header_branch
      %21 = sbr.rel (%p19) target = $region8
    $region5: #{tpu_custom_call.1} parent=1 // loop_body
      %s23 = ssub.s32 %s18, 1
      %s24 = ssub.s32 %s18, 2
      %s34 = sadd.s32 1, %s27
      %p35 = scmp.ge.s32.totalorder %s34, 1
      %s36 = scalar_select %p35, 0, %s34
      %s37 = sadd.s32 1, %s26
      %s38 = scalar_select %p35, %s37, %s26
      %p39 = scmp.ge.s32.totalorder %s38, 1
      %s40 = scalar_select %p39, 0, %s38
      %s41 = sadd.s32 1, %s25
      %s42 = scalar_select %p39, %s41, %s25
      %p43 = scmp.ge.s32.totalorder %s42, 2
      %s44 = scalar_select %p43, 0, %s42
      %s45 = ssub.s32 %s25, %s44
      %s46 = ssub.s32 %s26, %s40
      %s47 = sor.u32 %s45, %s46
      %s48 = ssub.s32 %s27, %s36
      %s49 = sor.u32 %s47, %s48
      %p50 = scmp.eq.s32.totalorder %s49, 0
      %s52 = sadd.s32 %s51, 1
      %s53 = scalar_select %p50, %s51, %s52
      %p56 = pneg %p50
      %p57 = scmp.eq.s32.totalorder %s18, 1
      %p58 = por %p56, %p57
      %p59 = scmp.ne.s32.totalorder %s51, %s54
      %p60 = scmp.eq.s32.totalorder %s18, 0
      %p61 = por %p59, %p60
      %p62 = scmp.ne.s32.totalorder %s51, %s54
      %p63 = scmp.eq.s32.totalorder %s23, 1
      %p64 = por %p62, %p63
      %p65 = scmp.ne.s32.totalorder %s54, %s55
      %p66 = scmp.eq.s32.totalorder %s23, 0
      %p67 = por %p65, %p66
      %p68 = scmp.ne.s32.totalorder %s54, %s55
      %p69 = scmp.eq.s32.totalorder %s24, 1
      %p70 = por %p68, %p69
      %p72 = scmp.ne.s32.totalorder %s55, %s71
      %p73 = scmp.eq.s32.totalorder %s24, 0
      %p74 = por %p72, %p73
      %s75 = ssub.s32 %s25, %s44
      %s76 = ssub.s32 %s27, %s36
      %s77 = sor.u32 %s75, %s76
      %p78 = scmp.eq.s32.totalorder %s77, 0
      %s80 = sadd.s32 %s79, 1
      %s81 = scalar_select %p78, %s79, %s80
      %p84 = pneg %p78
      %p85 = scmp.eq.s32.totalorder %s18, 1
      %p86 = por %p84, %p85
      %p87 = scmp.ne.s32.totalorder %s79, %s82
      %p88 = scmp.eq.s32.totalorder %s18, 0
      %p89 = por %p87, %p88
      %p90 = scmp.ne.s32.totalorder %s79, %s82
      %p91 = scmp.eq.s32.totalorder %s23, 1
      %p92 = por %p90, %p91
      %p93 = scmp.ne.s32.totalorder %s82, %s83
      %p94 = scmp.eq.s32.totalorder %s23, 0
      %p95 = por %p93, %p94
      %p96 = scmp.ne.s32.totalorder %s82, %s83
      %p97 = scmp.eq.s32.totalorder %s24, 1
      %p98 = por %p96, %p97
      %p100 = scmp.ne.s32.totalorder %s83, %s99
      %p101 = scmp.eq.s32.totalorder %s24, 0
      %p102 = por %p100, %p101
      %s104 = sadd.s32 %s103, 1
      %p107 = scmp.eq.s32.totalorder %s18, 1
      %p108 = scmp.ne.s32.totalorder %s103, %s105
      %p109 = scmp.eq.s32.totalorder %s18, 0
      %p110 = por %p108, %p109
      %p111 = scmp.ne.s32.totalorder %s103, %s105
      %p112 = scmp.eq.s32.totalorder %s23, 1
      %p113 = por %p111, %p112
      %p114 = scmp.ne.s32.totalorder %s105, %s106
      %p115 = scmp.eq.s32.totalorder %s23, 0
      %p116 = por %p114, %p115
      %p117 = scmp.ne.s32.totalorder %s105, %s106
      %p118 = scmp.eq.s32.totalorder %s24, 1
      %p119 = por %p117, %p118
      %p121 = scmp.ne.s32.totalorder %s106, %s120
      %p122 = scmp.eq.s32.totalorder %s24, 0
      %p123 = por %p121, %p122
      %s124 = ssub.s32 %s25, %s44
      %s125 = ssub.s32 %s26, %s40
      %s126 = sor.u32 %s124, %s125
      %p127 = scmp.eq.s32.totalorder %s126, 0
      %s129 = sadd.s32 %s128, 1
      %s130 = scalar_select %p127, %s128, %s129
      %p133 = pneg %p127
      %p134 = scmp.eq.s32.totalorder %s18, 1
      %p135 = por %p133, %p134
      %p136 = scmp.ne.s32.totalorder %s128, %s131
      %p137 = scmp.eq.s32.totalorder %s18, 0
      %p138 = por %p136, %p137
      %p139 = scmp.ne.s32.totalorder %s128, %s131
      %p140 = scmp.eq.s32.totalorder %s23, 1
      %p141 = por %p139, %p140
      %p142 = scmp.ne.s32.totalorder %s131, %s132
      %p143 = scmp.eq.s32.totalorder %s23, 0
      %p144 = por %p142, %p143
      %p145 = scmp.ne.s32.totalorder %s131, %s132
      %p146 = scmp.eq.s32.totalorder %s24, 1
      %p147 = por %p145, %p146
      %p149 = scmp.ne.s32.totalorder %s132, %s148
      %p150 = scmp.eq.s32.totalorder %s24, 0
      %p151 = por %p149, %p150
      %p152 = scmp.le.s32.totalorder 1, %s18
      %p153 = scmp.lt.s32.totalorder %s18, 3
      %p154 = pnand %p152, %p153
      %p155 = pneg %p154
      // Predicated region
      $region9: #{tpu_custom_call.1} parent=5 // pred_check
        _
      $region10: #{tpu_custom_call.1} parent=5 // pred_check_branch
        %157 = sbr.rel (%p154) target = $region12
      $region11: #{tpu_custom_call.1} parent=5 // pred_region
        %s158 = ssub.s32 %s18, 1
        // Predicated region
        $region13: #{tpu_custom_call.1} parent=11 // pred_check
          %p159 = pneg %p116
        $region14: #{tpu_custom_call.1} parent=11 // pred_check_branch
          %161 = sbr.rel (%p159) target = $region16
        $region15: #{tpu_custom_call.1} parent=11 // pred_region
          %s163 = ssub.s32 1024, 1024
          %164 = vsyncadd [#allocation7], %s163
          %s165 = sshll.u32 [#allocation8], 4
          %s166 = int_to_ptr.vmem [resolvable:$true] %s165
          %171 = dma.hbm_to_vmem [thread:$0]  %s2, 1024, %s166, [#allocation7], 64, 64, 4
        $region16: #{tpu_custom_call.1} parent=11 // pred_fallthru
          _
      $region12: #{tpu_custom_call.1} parent=5 // pred_fallthru
        _
      %p172 = scmp.lt.s32.totalorder %s18, 2
      // Predicated region
      $region17: #{tpu_custom_call.1} parent=5 // pred_check
        %p173 = pneg %p172
      $region18: #{tpu_custom_call.1} parent=5 // pred_check_branch
        %175 = sbr.rel (%p173) target = $region20
      $region19: #{tpu_custom_call.1} parent=5 // pred_region
        // Predicated region
        $region21: #{tpu_custom_call.1} parent=19 // pred_check
          %p176 = pneg %p61
        $region22: #{tpu_custom_call.1} parent=19 // pred_check_branch
          %178 = sbr.rel (%p176) target = $region24
        $region23: #{tpu_custom_call.1} parent=19 // pred_region
          %s179 = sand.u32 %s51, 1
          %s180 = scalar_lea.sflag [#allocation4], %s179
          %s181 = sand.u32 %s51, 1
          %s182 = smul.addr %s181, 64
          %s183 = scalar_lea.vmem [#allocation3], %s182
          %s184 = smul.u32 16, %s26
          %s186 = ssub.s32 1024, 1024
          %187 = vsyncadd %s180, %s186
          %s188 = sadd.s32 %s27, %s184
          %s189 = smul.addr %s25, 16
          %s190 = sadd.s32 %s188, %s189
          %s191 = smul.addr %s190, 64
          %s192 = scalar_lea.hbm %s0, %s191
          %s193 = sshll.u32 %s183, 4
          %s194 = int_to_ptr.vmem [resolvable:$true] %s193
          %199 = dma.hbm_to_vmem [thread:$0]  %s192, 1024, %s194, %s180, 64, 64, 4
        $region24: #{tpu_custom_call.1} parent=19 // pred_fallthru
          _
        // Predicated region
        $region25: #{tpu_custom_call.1} parent=19 // pred_check
          %p200 = pneg %p89
        $region26: #{tpu_custom_call.1} parent=19 // pred_check_branch
          %202 = sbr.rel (%p200) target = $region28
        $region27: #{tpu_custom_call.1} parent=19 // pred_region
          %s203 = sand.u32 %s18, 1
          %s204 = scalar_lea.sflag [#allocation7], %s203
          %s205 = sand.u32 %s79, 1
          %s206 = smul.addr %s205, 64
          %s207 = scalar_lea.vmem [#allocation6], %s206
          %s208 = smul.u32 16, %s27
          %s210 = ssub.s32 1024, 1024
          %211 = vsyncadd %s204, %s210
          %s212 = smul.addr %s25, 16
          %s213 = sadd.s32 %s208, %s212
          %s214 = smul.addr %s213, 64
          %s215 = scalar_lea.hbm %s1, %s214
          %s216 = sshll.u32 %s207, 4
          %s217 = int_to_ptr.vmem [resolvable:$true] %s216
          %222 = dma.hbm_to_vmem [thread:$0]  %s215, 1024, %s217, %s204, 64, 64, 4
        $region28: #{tpu_custom_call.1} parent=19 // pred_fallthru
          _
      $region20: #{tpu_custom_call.1} parent=5 // pred_fallthru
        _
      %p223 = scmp.le.s32.totalorder 1, %s18
      %p224 = scmp.lt.s32.totalorder %s18, 3
      %p225 = pnand %p223, %p224
      %p226 = pneg %p225
      // Predicated region
      $region29: #{tpu_custom_call.1} parent=5 // pred_check
        _
      $region30: #{tpu_custom_call.1} parent=5 // pred_check_branch
        %228 = sbr.rel (%p225) target = $region32
      $region31: #{tpu_custom_call.1} parent=5 // pred_region
        %s229 = ssub.s32 %s18, 1
        %s230 = sand.u32 %s54, 1
        %s231 = scalar_lea.sflag [#allocation4], %s230
        %s232 = sand.u32 %s54, 1
        %s233 = smul.addr %s232, 64
        %s234 = scalar_lea.vmem [#allocation3], %s233
        // Predicated region
        $region33: #{tpu_custom_call.1} parent=31 // pred_check
          %p235 = pneg %p67
        $region34: #{tpu_custom_call.1} parent=31 // pred_check_branch
          %237 = sbr.rel (%p235) target = $region36
        $region35: #{tpu_custom_call.1} parent=31 // pred_region
          %238 = dma.done %s231, 1024
        $region36: #{tpu_custom_call.1} parent=31 // pred_fallthru
          _
        %s239 = sand.u32 %s23, 1
        %s240 = scalar_lea.sflag [#allocation7], %s239
        %s241 = sand.u32 %s82, 1
        %s242 = smul.addr %s241, 64
        %s243 = scalar_lea.vmem [#allocation6], %s242
        // Predicated region
        $region37: #{tpu_custom_call.1} parent=31 // pred_check
          %p244 = pneg %p95
        $region38: #{tpu_custom_call.1} parent=31 // pred_check_branch
          %246 = sbr.rel (%p244) target = $region40
        $region39: #{tpu_custom_call.1} parent=31 // pred_region
          %247 = dma.done %s240, 1024
        $region40: #{tpu_custom_call.1} parent=31 // pred_fallthru
          _
        // Predicated region
        $region41: #{tpu_custom_call.1} parent=31 // pred_check
          %p248 = pneg %p116
        $region42: #{tpu_custom_call.1} parent=31 // pred_check_branch
          %250 = sbr.rel (%p248) target = $region44
        $region43: #{tpu_custom_call.1} parent=31 // pred_region
          %251 = dma.done [#allocation7], 1024
        $region44: #{tpu_custom_call.1} parent=31 // pred_fallthru
          _
        %s252 = sand.u32 %s54, 1
        %s253 = scalar_lea.sflag [#allocation4], %s252
        %s254 = sand.u32 %s54, 1
        %s255 = smul.addr %s254, 64
        %s256 = scalar_lea.vmem [#allocation3], %s255
        %p257 = pneg %p67
        %p258 = pneg %p64
        %s259 = sand.u32 %s23, 1
        %s260 = scalar_lea.sflag [#allocation7], %s259
        %s261 = sand.u32 %s82, 1
        %s262 = smul.addr %s261, 64
        %s263 = scalar_lea.vmem [#allocation6], %s262
        %p264 = pneg %p95
        %p265 = pneg %p92
        %p266 = pneg %p116
        %p267 = pneg %p113
        %p268 = pneg %p144
        %p269 = pneg %p141
        %s270 = sand.u32 %s131, 1
        %s271 = scalar_lea.sflag [#allocation5], %s270
        %s272 = sand.u32 %s131, 1
        %s273 = smul.addr %s272, 128
        %s274 = scalar_lea.vmem [#allocation9], %s273
        %s275 = smul.u32 16, %s29
        %s276 = smul.u32 16, %s30
        %s277 = smul.u32 16, %s29
        %p279 = scmp.eq.s32.totalorder %s30, 0
        // Predicated region
        $region45: #{tpu_custom_call.1} parent=31 // pred_check
          %p280 = pneg %p279
        $region46: #{tpu_custom_call.1} parent=31 // pred_check_branch
          %282 = sbr.rel (%p280) target = $region48
        $region47: #{tpu_custom_call.1} parent=31 // pred_region
          %283 = vst [vmem:[#allocation2] sm:$0xff] 0.0
          %284 = vst [vmem:[#allocation2 + $0x8] sm:$0xff] 0.0
          %285 = vst [vmem:[#allocation2 + $0x10] sm:$0xff] 0.0
          %286 = vst [vmem:[#allocation2 + $0x18] sm:$0xff] 0.0
          %287 = vst [vmem:[#allocation2 + $0x20] sm:$0xff] 0.0
          %288 = vst [vmem:[#allocation2 + $0x28] sm:$0xff] 0.0
          %289 = vst [vmem:[#allocation2 + $0x30] sm:$0xff] 0.0
          %290 = vst [vmem:[#allocation2 + $0x38] sm:$0xff] 0.0
          %291 = vst [vmem:[#allocation2 + $0x40] sm:$0xff] 0.0
          %292 = vst [vmem:[#allocation2 + $0x48] sm:$0xff] 0.0
          %293 = vst [vmem:[#allocation2 + $0x50] sm:$0xff] 0.0
          %294 = vst [vmem:[#allocation2 + $0x58] sm:$0xff] 0.0
          %295 = vst [vmem:[#allocation2 + $0x60] sm:$0xff] 0.0
          %296 = vst [vmem:[#allocation2 + $0x68] sm:$0xff] 0.0
          %297 = vst [vmem:[#allocation2 + $0x70] sm:$0xff] 0.0
          %298 = vst [vmem:[#allocation2 + $0x78] sm:$0xff] 0.0
        $region48: #{tpu_custom_call.1} parent=31 // pred_fallthru
          _
        %v299 = vld [vmem:[%s234] sm:$0xf]
        %v300 = vld [vmem:[%s234 + $0x4] sm:$0xf]
        %v301 = vld [vmem:[%s234 + $0x8] sm:$0xf]
        %v302 = vld [vmem:[%s234 + $0xc] sm:$0xf]
        %v303 = vld [vmem:[%s234 + $0x10] sm:$0xf]
        %v304 = vld [vmem:[%s234 + $0x14] sm:$0xf]
        %v305 = vld [vmem:[%s234 + $0x18] sm:$0xf]
        %v306 = vld [vmem:[%s234 + $0x1c] sm:$0xf]
        %v307 = vld [vmem:[%s234 + $0x20] sm:$0xf]
        %v308 = vld [vmem:[%s234 + $0x24] sm:$0xf]
        %v309 = vld [vmem:[%s234 + $0x28] sm:$0xf]
        %v310 = vld [vmem:[%s234 + $0x2c] sm:$0xf]
        %v311 = vld [vmem:[%s234 + $0x30] sm:$0xf]
        %v312 = vld [vmem:[%s234 + $0x34] sm:$0xf]
        %v313 = vld [vmem:[%s234 + $0x38] sm:$0xf]
        %v314 = vld [vmem:[%s234 + $0x3c] sm:$0xf]
        %v315 = vld [vmem:[%s243] sm:$0xf]
        %v316 = vld [vmem:[%s243 + $0x4] sm:$0xf]
        %v317 = vld [vmem:[%s243 + $0x8] sm:$0xf]
        %v318 = vld [vmem:[%s243 + $0xc] sm:$0xf]
        %v319 = vld [vmem:[%s243 + $0x10] sm:$0xf]
        %v320 = vld [vmem:[%s243 + $0x14] sm:$0xf]
        %v321 = vld [vmem:[%s243 + $0x18] sm:$0xf]
        %v322 = vld [vmem:[%s243 + $0x1c] sm:$0xf]
        %v323 = vld [vmem:[%s243 + $0x20] sm:$0xf]
        %v324 = vld [vmem:[%s243 + $0x24] sm:$0xf]
        %v325 = vld [vmem:[%s243 + $0x28] sm:$0xf]
        %v326 = vld [vmem:[%s243 + $0x2c] sm:$0xf]
        %v327 = vld [vmem:[%s243 + $0x30] sm:$0xf]
        %v328 = vld [vmem:[%s243 + $0x34] sm:$0xf]
        %v329 = vld [vmem:[%s243 + $0x38] sm:$0xf]
        %v330 = vld [vmem:[%s243 + $0x3c] sm:$0xf]
        %v331 = vld [vmem:[#allocation2] sm:$0xff]
        %v332 = vld [vmem:[#allocation2 + $0x8] sm:$0xff]
        %v333 = vld [vmem:[#allocation2 + $0x10] sm:$0xff]
        %v334 = vld [vmem:[#allocation2 + $0x18] sm:$0xff]
        %v335 = vld [vmem:[#allocation2 + $0x20] sm:$0xff]
        %v336 = vld [vmem:[#allocation2 + $0x28] sm:$0xff]
        %v337 = vld [vmem:[#allocation2 + $0x30] sm:$0xff]
        %v338 = vld [vmem:[#allocation2 + $0x38] sm:$0xff]
        %v339 = vld [vmem:[#allocation2 + $0x40] sm:$0xff]
        %v340 = vld [vmem:[#allocation2 + $0x48] sm:$0xff]
        %v341 = vld [vmem:[#allocation2 + $0x50] sm:$0xff]
        %v342 = vld [vmem:[#allocation2 + $0x58] sm:$0xff]
        %v343 = vld [vmem:[#allocation2 + $0x60] sm:$0xff]
        %v344 = vld [vmem:[#allocation2 + $0x68] sm:$0xff]
        %v345 = vld [vmem:[#allocation2 + $0x70] sm:$0xff]
        %v346 = vld [vmem:[#allocation2 + $0x78] sm:$0xff]
        %v363 = vunpack.c.l.b16 %v299
        %v364 = vunpack.c.l.b16 %v300
        %v365 = vunpack.c.l.b16 %v301
        %v366 = vunpack.c.l.b16 %v302
        %v367 = vunpack.c.l.b16 %v303
        %v368 = vunpack.c.l.b16 %v304
        %v369 = vunpack.c.l.b16 %v305
        %v370 = vunpack.c.l.b16 %v306
        %v371 = vunpack.c.l.b16 %v307
        %v372 = vunpack.c.l.b16 %v308
        %v373 = vunpack.c.l.b16 %v309
        %v374 = vunpack.c.l.b16 %v310
        %v375 = vunpack.c.l.b16 %v311
        %v376 = vunpack.c.l.b16 %v312
        %v377 = vunpack.c.l.b16 %v313
        %v378 = vunpack.c.l.b16 %v314
        %v379 = vpack.c.b16 %v364, %v363
        %v380 = vpack.c.b16 %v366, %v365
        %v381 = vpack.c.b16 %v368, %v367
        %v382 = vpack.c.b16 %v370, %v369
        %v383 = vpack.c.b16 %v372, %v371
        %v384 = vpack.c.b16 %v374, %v373
        %v385 = vpack.c.b16 %v376, %v375
        %v386 = vpack.c.b16 %v378, %v377
        %v411 = vunpack.c.l.b16 %v315
        %v412 = vunpack.c.l.b16 %v316
        %v413 = vunpack.c.l.b16 %v317
        %v414 = vunpack.c.l.b16 %v318
        %v415 = vunpack.c.l.b16 %v319
        %v416 = vunpack.c.l.b16 %v320
        %v417 = vunpack.c.l.b16 %v321
        %v418 = vunpack.c.l.b16 %v322
        %v419 = vunpack.c.l.b16 %v323
        %v420 = vunpack.c.l.b16 %v324
        %v421 = vunpack.c.l.b16 %v325
        %v422 = vunpack.c.l.b16 %v326
        %v423 = vunpack.c.l.b16 %v327
        %v424 = vunpack.c.l.b16 %v328
        %v425 = vunpack.c.l.b16 %v329
        %v426 = vunpack.c.l.b16 %v330
        %v427 = vpack.c.b16 %v412, %v411
        %v428 = vpack.c.b16 %v414, %v413
        %v429 = vpack.c.b16 %v416, %v415
        %v430 = vpack.c.b16 %v418, %v417
        %v431 = vpack.c.b16 %v420, %v419
        %v432 = vpack.c.b16 %v422, %v421
        %v433 = vpack.c.b16 %v424, %v423
        %v434 = vpack.c.b16 %v426, %v425
        %443 = vmatprep.subr.bf16.mxu0 0
        %444 = vmatpush1.bf16.msra.mxu0 %v434
        %445 = vmatprep.subr.bf16.mxu0 0
        %446 = vmatpush1.bf16.msra.mxu0 %v433
        %447 = vmatprep.subr.bf16.mxu0 0
        %448 = vmatpush1.bf16.msra.mxu0 %v432
        %449 = vmatprep.subr.bf16.mxu0 0
        %450 = vmatpush1.bf16.msra.mxu0 %v431
        %451 = vmatprep.subr.bf16.mxu0 0
        %452 = vmatpush1.bf16.msra.mxu0 %v430
        %453 = vmatprep.subr.bf16.mxu0 0
        %454 = vmatpush1.bf16.msra.mxu0 %v429
        %455 = vmatprep.subr.bf16.mxu0 0
        %456 = vmatpush1.bf16.msra.mxu0 %v428
        %457 = vmatprep.subr.bf16.mxu0 0
        %458 = vmatpush1.bf16.msra.mxu0 %v427
        %459 = vmatprep.subr.bf16.mxu0 0
        %460 = vmatpush2.bf16.msra.mxu0 0
        %461 = vmatprep.subr.bf16.mxu0 0
        %462 = vmatpush2.bf16.msra.mxu0 0
        %463 = vmatprep.subr.bf16.mxu0 0
        %464 = vmatpush2.bf16.msra.mxu0 0
        %465 = vmatprep.subr.bf16.mxu0 0
        %466 = vmatpush2.bf16.msra.mxu0 0
        %467 = vmatprep.subr.bf16.mxu0 0
        %468 = vmatpush2.bf16.msra.mxu0 0
        %469 = vmatprep.subr.bf16.mxu0 0
        %470 = vmatpush2.bf16.msra.mxu0 0
        %471 = vmatprep.subr.bf16.mxu0 0
        %472 = vmatpush2.bf16.msra.mxu0 0
        %473 = vmatprep.subr.bf16.mxu0 0
        %474 = vmatpush2.bf16.msra.mxu0 0
        %475 = vmatprep.mubr.bf16.mxu0 0
        %476 = vmatmul.mubr.bf16.gmra.mxu0 %v379
        %v477 = vpop.f32.mrf.mxu0
        %v478 = vadd.f32 0.0, %v477
        %v479 = vpop.f32.mrf.mxu0
        %v480 = vpop.f32.mrf.mxu0
        %v481 = vadd.f32 0.0, %v480
        %v482 = vpop.f32.mrf.mxu0
        %483 = vmatprep.mubr.bf16.mxu0 0
        %484 = vmatmul.mubr.bf16.gmra.mxu0 %v380
        %v485 = vpop.f32.mrf.mxu0
        %v486 = vadd.f32 0.0, %v485
        %v487 = vpop.f32.mrf.mxu0
        %v488 = vpop.f32.mrf.mxu0
        %v489 = vadd.f32 0.0, %v488
        %v490 = vpop.f32.mrf.mxu0
        %491 = vmatprep.mubr.bf16.mxu0 0
        %492 = vmatmul.mubr.bf16.gmra.mxu0 %v381
        %v493 = vpop.f32.mrf.mxu0
        %v494 = vadd.f32 0.0, %v493
        %v495 = vpop.f32.mrf.mxu0
        %v496 = vpop.f32.mrf.mxu0
        %v497 = vadd.f32 0.0, %v496
        %v498 = vpop.f32.mrf.mxu0
        %499 = vmatprep.mubr.bf16.mxu0 0
        %500 = vmatmul.mubr.bf16.gmra.mxu0 %v382
        %v501 = vpop.f32.mrf.mxu0
        %v502 = vadd.f32 0.0, %v501
        %v503 = vpop.f32.mrf.mxu0
        %v504 = vpop.f32.mrf.mxu0
        %v505 = vadd.f32 0.0, %v504
        %v506 = vpop.f32.mrf.mxu0
        %507 = vmatprep.mubr.bf16.mxu0 0
        %508 = vmatmul.mubr.bf16.gmra.mxu0 %v383
        %v509 = vpop.f32.mrf.mxu0
        %v510 = vadd.f32 0.0, %v509
        %v511 = vpop.f32.mrf.mxu0
        %v512 = vpop.f32.mrf.mxu0
        %v513 = vadd.f32 0.0, %v512
        %v514 = vpop.f32.mrf.mxu0
        %515 = vmatprep.mubr.bf16.mxu0 0
        %516 = vmatmul.mubr.bf16.gmra.mxu0 %v384
        %v517 = vpop.f32.mrf.mxu0
        %v518 = vadd.f32 0.0, %v517
        %v519 = vpop.f32.mrf.mxu0
        %v520 = vpop.f32.mrf.mxu0
        %v521 = vadd.f32 0.0, %v520
        %v522 = vpop.f32.mrf.mxu0
        %523 = vmatprep.mubr.bf16.mxu0 0
        %524 = vmatmul.mubr.bf16.gmra.mxu0 %v385
        %v525 = vpop.f32.mrf.mxu0
        %v526 = vadd.f32 0.0, %v525
        %v527 = vpop.f32.mrf.mxu0
        %v528 = vpop.f32.mrf.mxu0
        %v529 = vadd.f32 0.0, %v528
        %v530 = vpop.f32.mrf.mxu0
        %531 = vmatprep.mubr.bf16.mxu0 0
        %532 = vmatmul.mubr.bf16.gmra.mxu0 %v386
        %v533 = vpop.f32.mrf.mxu0
        %v534 = vadd.f32 0.0, %v533
        %v535 = vpop.f32.mrf.mxu0
        %v536 = vpop.f32.mrf.mxu0
        %v537 = vadd.f32 0.0, %v536
        %v538 = vpop.f32.mrf.mxu0
        %539 = vdwg.mxu0
        %v540 = vadd.f32 %v331, %v478
        %v541 = vadd.f32 %v332, %v481
        %v542 = vadd.f32 %v333, %v486
        %v543 = vadd.f32 %v334, %v489
        %v544 = vadd.f32 %v335, %v494
        %v545 = vadd.f32 %v336, %v497
        %v546 = vadd.f32 %v337, %v502
        %v547 = vadd.f32 %v338, %v505
        %v548 = vadd.f32 %v339, %v510
        %v549 = vadd.f32 %v340, %v513
        %v550 = vadd.f32 %v341, %v518
        %v551 = vadd.f32 %v342, %v521
        %v552 = vadd.f32 %v343, %v526
        %v553 = vadd.f32 %v344, %v529
        %v554 = vadd.f32 %v345, %v534
        %v555 = vadd.f32 %v346, %v537
        %556 = vst [vmem:[#allocation2] sm:$0xff] %v540
        %557 = vst [vmem:[#allocation2 + $0x8] sm:$0xff] %v541
        %558 = vst [vmem:[#allocation2 + $0x10] sm:$0xff] %v542
        %559 = vst [vmem:[#allocation2 + $0x18] sm:$0xff] %v543
        %560 = vst [vmem:[#allocation2 + $0x20] sm:$0xff] %v544
        %561 = vst [vmem:[#allocation2 + $0x28] sm:$0xff] %v545
        %562 = vst [vmem:[#allocation2 + $0x30] sm:$0xff] %v546
        %563 = vst [vmem:[#allocation2 + $0x38] sm:$0xff] %v547
        %564 = vst [vmem:[#allocation2 + $0x40] sm:$0xff] %v548
        %565 = vst [vmem:[#allocation2 + $0x48] sm:$0xff] %v549
        %566 = vst [vmem:[#allocation2 + $0x50] sm:$0xff] %v550
        %567 = vst [vmem:[#allocation2 + $0x58] sm:$0xff] %v551
        %568 = vst [vmem:[#allocation2 + $0x60] sm:$0xff] %v552
        %569 = vst [vmem:[#allocation2 + $0x68] sm:$0xff] %v553
        %570 = vst [vmem:[#allocation2 + $0x70] sm:$0xff] %v554
        %571 = vst [vmem:[#allocation2 + $0x78] sm:$0xff] %v555
        // Predicated region
        $region49: #{tpu_custom_call.1} parent=31 // pred_check
          %p572 = pneg %p279
        $region50: #{tpu_custom_call.1} parent=31 // pred_check_branch
          %574 = sbr.rel (%p572) target = $region52
        $region51: #{tpu_custom_call.1} parent=31 // pred_region
          %v575 = vld [vmem:[#allocation2] sm:$0xff]
          %v576 = vld [vmem:[#allocation2 + $0x8] sm:$0xff]
          %v577 = vld [vmem:[#allocation2 + $0x10] sm:$0xff]
          %v578 = vld [vmem:[#allocation2 + $0x18] sm:$0xff]
          %v579 = vld [vmem:[#allocation2 + $0x20] sm:$0xff]
          %v580 = vld [vmem:[#allocation2 + $0x28] sm:$0xff]
          %v581 = vld [vmem:[#allocation2 + $0x30] sm:$0xff]
          %v582 = vld [vmem:[#allocation2 + $0x38] sm:$0xff]
          %v583 = vld [vmem:[#allocation2 + $0x40] sm:$0xff]
          %v584 = vld [vmem:[#allocation2 + $0x48] sm:$0xff]
          %v585 = vld [vmem:[#allocation2 + $0x50] sm:$0xff]
          %v586 = vld [vmem:[#allocation2 + $0x58] sm:$0xff]
          %v587 = vld [vmem:[#allocation2 + $0x60] sm:$0xff]
          %v588 = vld [vmem:[#allocation2 + $0x68] sm:$0xff]
          %v589 = vld [vmem:[#allocation2 + $0x70] sm:$0xff]
          %v590 = vld [vmem:[#allocation2 + $0x78] sm:$0xff]
          %v591 = vpack.c.bf16 %v576, %v575
          %v592 = vpack.c.bf16 %v578, %v577
          %v593 = vpack.c.bf16 %v580, %v579
          %v594 = vpack.c.bf16 %v582, %v581
          %v595 = vpack.c.bf16 %v584, %v583
          %v596 = vpack.c.bf16 %v586, %v585
          %v597 = vpack.c.bf16 %v588, %v587
          %v598 = vpack.c.bf16 %v590, %v589
          %v599 = vld [vmem:[#allocation8] sm:$0xf]
          %v600 = vld [vmem:[#allocation8 + $0x4] sm:$0xf]
          %v601 = vld [vmem:[#allocation8 + $0x8] sm:$0xf]
          %v602 = vld [vmem:[#allocation8 + $0xc] sm:$0xf]
          %v603 = vld [vmem:[#allocation8 + $0x10] sm:$0xf]
          %v604 = vld [vmem:[#allocation8 + $0x14] sm:$0xf]
          %v605 = vld [vmem:[#allocation8 + $0x18] sm:$0xf]
          %v606 = vld [vmem:[#allocation8 + $0x1c] sm:$0xf]
          %v607 = vld [vmem:[#allocation8 + $0x20] sm:$0xf]
          %v608 = vld [vmem:[#allocation8 + $0x24] sm:$0xf]
          %v609 = vld [vmem:[#allocation8 + $0x28] sm:$0xf]
          %v610 = vld [vmem:[#allocation8 + $0x2c] sm:$0xf]
          %v611 = vld [vmem:[#allocation8 + $0x30] sm:$0xf]
          %v612 = vld [vmem:[#allocation8 + $0x34] sm:$0xf]
          %v613 = vld [vmem:[#allocation8 + $0x38] sm:$0xf]
          %v614 = vld [vmem:[#allocation8 + $0x3c] sm:$0xf]
          %v631 = vunpack.c.l.b16 %v599
          %v632 = vunpack.c.l.b16 %v600
          %v633 = vunpack.c.l.b16 %v601
          %v634 = vunpack.c.l.b16 %v602
          %v635 = vunpack.c.l.b16 %v603
          %v636 = vunpack.c.l.b16 %v604
          %v637 = vunpack.c.l.b16 %v605
          %v638 = vunpack.c.l.b16 %v606
          %v639 = vunpack.c.l.b16 %v607
          %v640 = vunpack.c.l.b16 %v608
          %v641 = vunpack.c.l.b16 %v609
          %v642 = vunpack.c.l.b16 %v610
          %v643 = vunpack.c.l.b16 %v611
          %v644 = vunpack.c.l.b16 %v612
          %v645 = vunpack.c.l.b16 %v613
          %v646 = vunpack.c.l.b16 %v614
          %v647 = vpack.c.b16 %v632, %v631
          %v648 = vpack.c.b16 %v634, %v633
          %v649 = vpack.c.b16 %v636, %v635
          %v650 = vpack.c.b16 %v638, %v637
          %v651 = vpack.c.b16 %v640, %v639
          %v652 = vpack.c.b16 %v642, %v641
          %v653 = vpack.c.b16 %v644, %v643
          %v654 = vpack.c.b16 %v646, %v645
          %663 = vmatprep.subr.bf16.mxu0 0
          %664 = vmatpush1.bf16.msra.mxu0 %v654
          %665 = vmatprep.subr.bf16.mxu0 0
          %666 = vmatpush1.bf16.msra.mxu0 %v653
          %667 = vmatprep.subr.bf16.mxu0 0
          %668 = vmatpush1.bf16.msra.mxu0 %v652
          %669 = vmatprep.subr.bf16.mxu0 0
          %670 = vmatpush1.bf16.msra.mxu0 %v651
          %671 = vmatprep.subr.bf16.mxu0 0
          %672 = vmatpush1.bf16.msra.mxu0 %v650
          %673 = vmatprep.subr.bf16.mxu0 0
          %674 = vmatpush1.bf16.msra.mxu0 %v649
          %675 = vmatprep.subr.bf16.mxu0 0
          %676 = vmatpush1.bf16.msra.mxu0 %v648
          %677 = vmatprep.subr.bf16.mxu0 0
          %678 = vmatpush1.bf16.msra.mxu0 %v647
          %679 = vmatprep.subr.bf16.mxu0 0
          %680 = vmatpush2.bf16.msra.mxu0 0
          %681 = vmatprep.subr.bf16.mxu0 0
          %682 = vmatpush2.bf16.msra.mxu0 0
          %683 = vmatprep.subr.bf16.mxu0 0
          %684 = vmatpush2.bf16.msra.mxu0 0
          %685 = vmatprep.subr.bf16.mxu0 0
          %686 = vmatpush2.bf16.msra.mxu0 0
          %687 = vmatprep.subr.bf16.mxu0 0
          %688 = vmatpush2.bf16.msra.mxu0 0
          %689 = vmatprep.subr.bf16.mxu0 0
          %690 = vmatpush2.bf16.msra.mxu0 0
          %691 = vmatprep.subr.bf16.mxu0 0
          %692 = vmatpush2.bf16.msra.mxu0 0
          %693 = vmatprep.subr.bf16.mxu0 0
          %694 = vmatpush2.bf16.msra.mxu0 0
          %695 = vmatprep.mubr.bf16.mxu0 0
          %696 = vmatmul.mubr.bf16.gmra.mxu0 %v591
          %v697 = vpop.f32.mrf.mxu0
          %v698 = vadd.f32 0.0, %v697
          %v699 = vpop.f32.mrf.mxu0
          %v700 = vpop.f32.mrf.mxu0
          %v701 = vadd.f32 0.0, %v700
          %v702 = vpop.f32.mrf.mxu0
          %703 = vmatprep.mubr.bf16.mxu0 0
          %704 = vmatmul.mubr.bf16.gmra.mxu0 %v592
          %v705 = vpop.f32.mrf.mxu0
          %v706 = vadd.f32 0.0, %v705
          %v707 = vpop.f32.mrf.mxu0
          %v708 = vpop.f32.mrf.mxu0
          %v709 = vadd.f32 0.0, %v708
          %v710 = vpop.f32.mrf.mxu0
          %711 = vmatprep.mubr.bf16.mxu0 0
          %712 = vmatmul.mubr.bf16.gmra.mxu0 %v593
          %v713 = vpop.f32.mrf.mxu0
          %v714 = vadd.f32 0.0, %v713
          %v715 = vpop.f32.mrf.mxu0
          %v716 = vpop.f32.mrf.mxu0
          %v717 = vadd.f32 0.0, %v716
          %v718 = vpop.f32.mrf.mxu0
          %719 = vmatprep.mubr.bf16.mxu0 0
          %720 = vmatmul.mubr.bf16.gmra.mxu0 %v594
          %v721 = vpop.f32.mrf.mxu0
          %v722 = vadd.f32 0.0, %v721
          %v723 = vpop.f32.mrf.mxu0
          %v724 = vpop.f32.mrf.mxu0
          %v725 = vadd.f32 0.0, %v724
          %v726 = vpop.f32.mrf.mxu0
          %727 = vmatprep.mubr.bf16.mxu0 0
          %728 = vmatmul.mubr.bf16.gmra.mxu0 %v595
          %v729 = vpop.f32.mrf.mxu0
          %v730 = vadd.f32 0.0, %v729
          %v731 = vpop.f32.mrf.mxu0
          %v732 = vpop.f32.mrf.mxu0
          %v733 = vadd.f32 0.0, %v732
          %v734 = vpop.f32.mrf.mxu0
          %735 = vmatprep.mubr.bf16.mxu0 0
          %736 = vmatmul.mubr.bf16.gmra.mxu0 %v596
          %v737 = vpop.f32.mrf.mxu0
          %v738 = vadd.f32 0.0, %v737
          %v739 = vpop.f32.mrf.mxu0
          %v740 = vpop.f32.mrf.mxu0
          %v741 = vadd.f32 0.0, %v740
          %v742 = vpop.f32.mrf.mxu0
          %743 = vmatprep.mubr.bf16.mxu0 0
          %744 = vmatmul.mubr.bf16.gmra.mxu0 %v597
          %v745 = vpop.f32.mrf.mxu0
          %v746 = vadd.f32 0.0, %v745
          %v747 = vpop.f32.mrf.mxu0
          %v748 = vpop.f32.mrf.mxu0
          %v749 = vadd.f32 0.0, %v748
          %v750 = vpop.f32.mrf.mxu0
          %751 = vmatprep.mubr.bf16.mxu0 0
          %752 = vmatmul.mubr.bf16.gmra.mxu0 %v598
          %v753 = vpop.f32.mrf.mxu0
          %v754 = vadd.f32 0.0, %v753
          %v755 = vpop.f32.mrf.mxu0
          %v756 = vpop.f32.mrf.mxu0
          %v757 = vadd.f32 0.0, %v756
          %v758 = vpop.f32.mrf.mxu0
          %759 = vdwg.mxu0
          %760 = vst [vmem:[%s274] sm:$0xff] %v698
          %761 = vst [vmem:[%s274 + $0x8] sm:$0xff] %v701
          %762 = vst [vmem:[%s274 + $0x10] sm:$0xff] %v706
          %763 = vst [vmem:[%s274 + $0x18] sm:$0xff] %v709
          %764 = vst [vmem:[%s274 + $0x20] sm:$0xff] %v714
          %765 = vst [vmem:[%s274 + $0x28] sm:$0xff] %v717
          %766 = vst [vmem:[%s274 + $0x30] sm:$0xff] %v722
          %767 = vst [vmem:[%s274 + $0x38] sm:$0xff] %v725
          %768 = vst [vmem:[%s274 + $0x40] sm:$0xff] %v730
          %769 = vst [vmem:[%s274 + $0x48] sm:$0xff] %v733
          %770 = vst [vmem:[%s274 + $0x50] sm:$0xff] %v738
          %771 = vst [vmem:[%s274 + $0x58] sm:$0xff] %v741
          %772 = vst [vmem:[%s274 + $0x60] sm:$0xff] %v746
          %773 = vst [vmem:[%s274 + $0x68] sm:$0xff] %v749
          %774 = vst [vmem:[%s274 + $0x70] sm:$0xff] %v754
          %775 = vst [vmem:[%s274 + $0x78] sm:$0xff] %v757
        $region52: #{tpu_custom_call.1} parent=31 // pred_fallthru
          _
        %s776 = sand.u32 %s131, 1
        %s777 = scalar_lea.sflag [#allocation5], %s776
        %s778 = sand.u32 %s131, 1
        %s779 = smul.addr %s778, 128
        %s780 = scalar_lea.vmem [#allocation9], %s779
        // Predicated region
        $region53: #{tpu_custom_call.1} parent=31 // pred_check
          %p781 = pneg %p141
        $region54: #{tpu_custom_call.1} parent=31 // pred_check_branch
          %783 = sbr.rel (%p781) target = $region56
        $region55: #{tpu_custom_call.1} parent=31 // pred_region
          %s784 = smul.u32 16, %s29
          %s786 = ssub.s32 2048, 2048
          %787 = vsyncadd %s777, %s786
          %s788 = smul.addr %s28, 16
          %s789 = sadd.s32 %s784, %s788
          %s790 = smul.addr %s789, 128
          %s791 = scalar_lea.hbm %s3, %s790
          %s792 = sshll.u32 %s780, 4
          %s793 = int_to_ptr.vmem [resolvable:$true] %s792
          %798 = dma.vmem_to_hbm [thread:$0]  %s793, 2048, %s791, %s777, 128, 128, 8
        $region56: #{tpu_custom_call.1} parent=31 // pred_fallthru
          _
      $region32: #{tpu_custom_call.1} parent=5 // pred_fallthru
        _
      %p799 = scmp.le.s32.totalorder 2, %s18
      // Predicated region
      $region57: #{tpu_custom_call.1} parent=5 // pred_check
        %p800 = pneg %p799
      $region58: #{tpu_custom_call.1} parent=5 // pred_check_branch
        %802 = sbr.rel (%p800) target = $region60
      $region59: #{tpu_custom_call.1} parent=5 // pred_region
        %s803 = ssub.s32 %s18, 2
        // Predicated region
        $region61: #{tpu_custom_call.1} parent=59 // pred_check
          %p804 = pneg %p147
        $region62: #{tpu_custom_call.1} parent=59 // pred_check_branch
          %806 = sbr.rel (%p804) target = $region64
        $region63: #{tpu_custom_call.1} parent=59 // pred_region
          %s807 = sand.u32 %s132, 1
          %s808 = scalar_lea.sflag [#allocation5], %s807
          %s809 = sand.u32 %s132, 1
          %s810 = smul.addr %s809, 128
          %s811 = scalar_lea.vmem [#allocation9], %s810
          %812 = dma.done %s808, 2048
        $region64: #{tpu_custom_call.1} parent=59 // pred_fallthru
          _
      $region60: #{tpu_custom_call.1} parent=5 // pred_fallthru
        _
    $region6: #{tpu_custom_call.1} parent=1 // loop_footer
      %s22 = sadd.s32 1, %s18
    $region7: #{tpu_custom_call.1} parent=1 // loop_footer_branch
      %17 = sbr.rel target = $region3
    $region8: #{tpu_custom_call.1} parent=1 // loop_exit
      _
    %813 = vsyncpa [#allocation4], 1
    %s814 = scalar_lea.sflag [#allocation4], 1
    %815 = vsyncpa %s814, 1
    %816 = vsyncpa [#allocation7], 1
    %s817 = scalar_lea.sflag [#allocation7], 1
    %818 = vsyncpa %s817, 1
    %819 = vsyncpa [#allocation5], 1
    %s820 = scalar_lea.sflag [#allocation5], 1
    %821 = vsyncpa %s820, 1

</llo_original>
